<compile_context>
chip_gen: v6e
topology: v6e:2x2x1
jax: 0.10.0
libtpu: 0.0.40
codegen_flags: <defaults>
</compile_context>

<pallas_src>
import functools

import jax
import jax.numpy as jnp
from jax.experimental import pallas as pl
from jax.experimental.pallas import tpu as pltpu


def _round_up(x, m):
    return ((x + m - 1) // m) * m


def _choose_tiling(batch8, requested):
    """Pick (tile_b, padded_batch).

    Prefers (a) >= 2 grid steps so v7x megacore can shard the batch axis, and
    (b) a tile that exactly divides the 8-rounded batch so no full-array
    jnp.pad copy is needed. Falls back to padding only when the best exact
    divisor would make the tile pathologically small (per-step overhead).
    """
    requested = max(8, _round_up(requested, 8))
    cap = requested
    if batch8 >= 16:  # keep >= 2 grid steps when the batch allows it (v7x: 2 TCs)
        cap = min(cap, max(8, (batch8 // 2) // 8 * 8))
    # Largest multiple-of-8 divisor of batch8 that is <= cap.
    n = batch8 // 8
    best = 8
    d = 1
    while d * d <= n:
        if n % d == 0:
            for q in (d, n // d):
                t = q * 8
                if best < t <= cap:
                    best = t
        d += 1
    if best == cap or best == batch8 or best >= 256:
        return best, batch8                       # no padding beyond 8-rounding
    return cap, _round_up(batch8, cap)            # rare fallback: pad to tile


def mlp1_kernel(x_ref,
                w1_ref, b1_ref,
                w2_ref, b2_ref,
                w3h_ref, b3h_ref,
                out_ref,
                *, output_dim):
    x = x_ref[...]

    # l_1 = sigmoid(input(x))
    l1 = jax.nn.sigmoid(
        jnp.dot(x, w1_ref[...], preferred_element_type=jnp.float32) + b1_ref[...])

    # l_2 = sigmoid(hidden(l_1))
    l2 = jax.nn.sigmoid(
        jnp.dot(l1, w2_ref[...], preferred_element_type=jnp.float32) + b2_ref[...])

    # Fused output + hyp head: single MXU pass of width output_dim + 1.
    raw = jnp.dot(l2, w3h_ref[...], preferred_element_type=jnp.float32) + b3h_ref[...]
    w_un = raw[:, :output_dim]
    hyp = jax.nn.sigmoid(raw[:, output_dim:output_dim + 1]) * 5.0 + 1.0

    # w_pred = softmax(w_un, dim=1). Exact divide: EUP is nowhere near
    # saturated here, so approx reciprocal buys nothing and costs accuracy.
    m = jnp.max(w_un, axis=-1, keepdims=True)
    e = jnp.exp(w_un - m)
    w_pred = e / jnp.sum(e, axis=-1, keepdims=True)

    # Single lane-contiguous store of the packed slab [w_pred | w_un | hyp].
    out_ref[...] = jnp.concatenate([w_pred, w_un, hyp], axis=-1).astype(out_ref.dtype)


def my_mlp1_forward(x, params, *, tile_b=1024, out_dtype=jnp.float32):
    """x: (batch, input_dim) float32. params: dict of weights/biases.

    Returns (w_pred, hyp, w_un) matching the PyTorch module (norm_type='softmax').
    """
    batch, input_dim = x.shape
    h1_dim = params["w1"].shape[1]
    h2_dim = params["w2"].shape[1]
    output_dim = params["w3"].shape[1]
    out_width = 2 * output_dim + 1

    # Fuse the hyp head into the output matmul (layout plumbing in the wrapper).
    w3h = jnp.concatenate([params["w3"], params["wh"]], axis=1)   # (h2, D+1)
    b3h = jnp.concatenate([params["b3"], params["bh"]], axis=1)   # (1,  D+1)

    batch8 = _round_up(batch, 8)
    tile_b, padded_batch = _choose_tiling(batch8, tile_b)
    if padded_batch != batch:
        # Only hit when batch % 8 != 0 or in the rare "no good divisor" fallback.
        x = jnp.pad(x, ((0, padded_batch - batch), (0, 0)))

    grid = (padded_batch // tile_b,)

    # --- Cost / VMEM bookkeeping -------------------------------------------
    out_itemsize = jnp.dtype(out_dtype).itemsize
    weight_bytes = 4 * (input_dim * h1_dim + h1_dim * h2_dim
                        + h2_dim * (output_dim + 1)
                        + h1_dim + h2_dim + output_dim + 1)
    flops = 2 * padded_batch * (input_dim * h1_dim + h1_dim * h2_dim
                                + h2_dim * (output_dim + 1))
    transcendentals = padded_batch * (h1_dim + h2_dim + 1 + output_dim)
    bytes_accessed = padded_batch * (input_dim * 4 + out_width * out_itemsize) + weight_bytes
    cost = pl.CostEstimate(flops=int(flops),
                           transcendentals=int(transcendentals),
                           bytes_accessed=int(bytes_accessed))

    # Double-buffered x/out tiles + lane-padded (to 128) f32 intermediates.
    x_tile_bytes = tile_b * input_dim * 4
    out_tile_bytes = tile_b * out_width * out_itemsize
    interm_bytes = 3 * tile_b * 128 * 4
    vmem_est = 2 * (x_tile_bytes + out_tile_bytes) + interm_bytes + 2 * weight_bytes

    compiler_kwargs = dict(dimension_semantics=("parallel",))
    if vmem_est > 12 * 1024 * 1024:
        # Raise the scoped-VMEM limit (v5e default is 16 MiB); cap well below
        # v7x's 64 MiB physical VMEM.
        compiler_kwargs["vmem_limit_bytes"] = min(int(vmem_est * 1.5), 48 * 1024 * 1024)
    # ------------------------------------------------------------------------

    kernel = functools.partial(mlp1_kernel, output_dim=output_dim)

    def _resident(shape):
        # Whole-array block, constant index -> stays in VMEM across grid steps.
        return pl.BlockSpec(shape, lambda i: (0, 0))

    packed = pl.pallas_call(
        kernel,
        out_shape=jax.ShapeDtypeStruct((padded_batch, out_width), out_dtype),
        grid=grid,
        in_specs=[
            pl.BlockSpec((tile_b, input_dim), lambda i: (i, 0)),   # x tile
            _resident((input_dim, h1_dim)),                        # w1
            _resident((1, h1_dim)),                                # b1
            _resident((h1_dim, h2_dim)),                           # w2
            _resident((1, h2_dim)),                                # b2
            _resident((h2_dim, output_dim + 1)),                   # w3 | wh
            _resident((1, output_dim + 1)),                        # b3 | bh
        ],
        out_specs=pl.BlockSpec((tile_b, out_width), lambda i: (i, 0)),
        compiler_params=pltpu.CompilerParams(**compiler_kwargs),
        cost_estimate=cost,
    )(x,
      params["w1"], params["b1"],
      params["w2"], params["b2"],
      w3h, b3h)

    w_pred = packed[:batch, 0:output_dim]
    w_un = packed[:batch, output_dim:2 * output_dim]
    hyp = packed[:batch, 2 * output_dim:2 * output_dim + 1]
    return w_pred, hyp, w_un


def init_params(key, input_dim, output_dim, h1_dim, h2_dim):
    """Deterministic synthetic params. Weights stored as (in, out)."""
    ks = jax.random.split(key, 8)
    scale = 0.1
    return {
        "w1": scale * jax.random.normal(ks[0], (input_dim, h1_dim), jnp.float32),
        "b1": scale * jax.random.normal(ks[1], (1, h1_dim), jnp.float32),
        "w2": scale * jax.random.normal(ks[2], (h1_dim, h2_dim), jnp.float32),
        "b2": scale * jax.random.normal(ks[3], (1, h2_dim), jnp.float32),
        "w3": scale * jax.random.normal(ks[4], (h2_dim, output_dim), jnp.float32),
        "b3": scale * jax.random.normal(ks[5], (1, output_dim), jnp.float32),
        "wh": scale * jax.random.normal(ks[6], (h2_dim, 1), jnp.float32),
        "bh": scale * jax.random.normal(ks[7], (1, 1), jnp.float32),
    }


def reference_forward(x, p):
    l1 = jax.nn.sigmoid(x @ p["w1"] + p["b1"])
    l2 = jax.nn.sigmoid(l1 @ p["w2"] + p["b2"])
    w_un = l2 @ p["w3"] + p["b3"]
    hyp = jax.nn.sigmoid(l2 @ p["wh"] + p["bh"]) * 5.0 + 1.0
    w_pred = jax.nn.softmax(w_un, axis=1)
    return w_pred, hyp, w_un


if __name__ == "__main__":
    # Small shapes; batch=64 with the default tile_b exercises a 2-step grid
    # (the tile chooser caps at padded_batch // 2 = 32 for the v7x rule).
    batch, input_dim, output_dim, h1_dim, h2_dim = 64, 16, 16, 32, 32

    key = jax.random.PRNGKey(0)
    kx, kp = jax.random.split(key)
    x = jax.random.normal(kx, (batch, input_dim), jnp.float32)
    params = init_params(kp, input_dim, output_dim, h1_dim, h2_dim)

    w_pred, hyp, w_un = my_mlp1_forward(x, params)
    jax.block_until_ready((w_pred, hyp, w_un))

    # Sanity check against a pure-JAX reference (exact softmax divide now).
    w_pred_ref, hyp_ref, w_un_ref = reference_forward(x, params)
    assert jnp.allclose(w_pred, w_pred_ref, atol=1e-5, rtol=1e-5), "w_pred mismatch"
    assert jnp.allclose(hyp, hyp_ref, atol=1e-5), "hyp mismatch"
    assert jnp.allclose(w_un, w_un_ref, atol=1e-5), "w_un mismatch"
    # softmax rows should sum to 1 with the exact reciprocal
    assert jnp.allclose(jnp.sum(w_pred, axis=1), 1.0, atol=1e-5), "softmax not normalized"

    print("KERNEL_OK")
</pallas_src>

<mosaic_0001>
module attributes {stable_mosaic.version = 11 : i64} {
  func.func @mlp1_kernel(%arg0: i32, %arg1: memref<32x16xf32, #tpu.memory_space<vmem>>, %arg2: memref<16x32xf32, #tpu.memory_space<vmem>>, %arg3: memref<1x32xf32, #tpu.memory_space<vmem>>, %arg4: memref<32x32xf32, #tpu.memory_space<vmem>>, %arg5: memref<1x32xf32, #tpu.memory_space<vmem>>, %arg6: memref<32x17xf32, #tpu.memory_space<vmem>>, %arg7: memref<1x17xf32, #tpu.memory_space<vmem>>, %arg8: memref<32x33xf32, #tpu.memory_space<vmem>>) attributes {dimension_semantics = [#tpu.dimension_semantics<parallel>], iteration_bounds = array<i64: 2>, scalar_prefetch = 0 : i64, scratch_operands = 0 : i64, tpu.core_type = #tpu.core_type<tc>, window_params = [{transform_indices = @transform_0, window_bounds = array<i64: 32, 16>}, {pipeline_mode = #tpu.pipeline_mode<synchronous>, transform_indices = @transform_1, window_bounds = array<i64: 16, 32>}, {pipeline_mode = #tpu.pipeline_mode<synchronous>, transform_indices = @transform_2, window_bounds = array<i64: 1, 32>}, {pipeline_mode = #tpu.pipeline_mode<synchronous>, transform_indices = @transform_3, window_bounds = array<i64: 32, 32>}, {pipeline_mode = #tpu.pipeline_mode<synchronous>, transform_indices = @transform_4, window_bounds = array<i64: 1, 32>}, {pipeline_mode = #tpu.pipeline_mode<synchronous>, transform_indices = @transform_5, window_bounds = array<i64: 32, 17>}, {pipeline_mode = #tpu.pipeline_mode<synchronous>, transform_indices = @transform_6, window_bounds = array<i64: 1, 17>}, {transform_indices = @transform_7, window_bounds = array<i64: 32, 33>}]} {
    %c0 = arith.constant 0 : index
    %c0_0 = arith.constant 0 : index
    %0 = vector.load %arg1[%c0, %c0_0] : memref<32x16xf32, #tpu.memory_space<vmem>>, vector<32x16xf32>
    %c0_1 = arith.constant 0 : index
    %c0_2 = arith.constant 0 : index
    %1 = vector.load %arg2[%c0_1, %c0_2] : memref<16x32xf32, #tpu.memory_space<vmem>>, vector<16x32xf32>
    %cst = arith.constant dense<0.000000e+00> : vector<32x32xf32>
    %2 = tpu.matmul %0, %1, %cst {dimension_numbers = #tpu.dot_dimension_numbers<[1], [0], [0], [1], [0, 0, 1, 1], [], []>} : vector<32x16xf32>, vector<16x32xf32>, vector<32x32xf32> -> vector<32x32xf32>
    %c0_3 = arith.constant 0 : index
    %c0_4 = arith.constant 0 : index
    %3 = vector.load %arg3[%c0_3, %c0_4] : memref<1x32xf32, #tpu.memory_space<vmem>>, vector<1x32xf32>
    %4 = vector.broadcast %3 : vector<1x32xf32> to vector<32x32xf32>
    %5 = arith.addf %2, %4 : vector<32x32xf32>
    %6 = arith.negf %5 : vector<32x32xf32>
    %7 = math.exp %6 : vector<32x32xf32>
    %cst_5 = arith.constant 1.000000e+00 : f32
    %8 = vector.broadcast %cst_5 : f32 to vector<32x32xf32>
    %9 = arith.addf %8, %7 : vector<32x32xf32>
    %10 = arith.divf %8, %9 : vector<32x32xf32>
    %c0_6 = arith.constant 0 : index
    %c0_7 = arith.constant 0 : index
    %11 = vector.load %arg4[%c0_6, %c0_7] : memref<32x32xf32, #tpu.memory_space<vmem>>, vector<32x32xf32>
    %cst_8 = arith.constant dense<0.000000e+00> : vector<32x32xf32>
    %12 = tpu.matmul %10, %11, %cst_8 {dimension_numbers = #tpu.dot_dimension_numbers<[1], [0], [0], [1], [0, 0, 1, 1], [], []>} : vector<32x32xf32>, vector<32x32xf32>, vector<32x32xf32> -> vector<32x32xf32>
    %c0_9 = arith.constant 0 : index
    %c0_10 = arith.constant 0 : index
    %13 = vector.load %arg5[%c0_9, %c0_10] : memref<1x32xf32, #tpu.memory_space<vmem>>, vector<1x32xf32>
    %14 = vector.broadcast %13 : vector<1x32xf32> to vector<32x32xf32>
    %15 = arith.addf %12, %14 : vector<32x32xf32>
    %16 = arith.negf %15 : vector<32x32xf32>
    %17 = math.exp %16 : vector<32x32xf32>
    %cst_11 = arith.constant 1.000000e+00 : f32
    %18 = vector.broadcast %cst_11 : f32 to vector<32x32xf32>
    %19 = arith.addf %18, %17 : vector<32x32xf32>
    %20 = arith.divf %18, %19 : vector<32x32xf32>
    %c0_12 = arith.constant 0 : index
    %c0_13 = arith.constant 0 : index
    %21 = vector.load %arg6[%c0_12, %c0_13] : memref<32x17xf32, #tpu.memory_space<vmem>>, vector<32x17xf32>
    %cst_14 = arith.constant dense<0.000000e+00> : vector<32x17xf32>
    %22 = tpu.matmul %20, %21, %cst_14 {dimension_numbers = #tpu.dot_dimension_numbers<[1], [0], [0], [1], [0, 0, 1, 1], [], []>} : vector<32x32xf32>, vector<32x17xf32>, vector<32x17xf32> -> vector<32x17xf32>
    %c0_15 = arith.constant 0 : index
    %c0_16 = arith.constant 0 : index
    %23 = vector.load %arg7[%c0_15, %c0_16] : memref<1x17xf32, #tpu.memory_space<vmem>>, vector<1x17xf32>
    %24 = vector.broadcast %23 : vector<1x17xf32> to vector<32x17xf32>
    %25 = arith.addf %22, %24 : vector<32x17xf32>
    %26 = vector.extract_strided_slice %25 {offsets = [0, 0], sizes = [32, 16], strides = [1, 1]} : vector<32x17xf32> to vector<32x16xf32>
    %27 = vector.extract_strided_slice %25 {offsets = [0, 16], sizes = [32, 1], strides = [1, 1]} : vector<32x17xf32> to vector<32x1xf32>
    %28 = arith.negf %27 : vector<32x1xf32>
    %29 = math.exp %28 : vector<32x1xf32>
    %cst_17 = arith.constant 1.000000e+00 : f32
    %30 = vector.broadcast %cst_17 : f32 to vector<32x1xf32>
    %31 = arith.addf %30, %29 : vector<32x1xf32>
    %32 = arith.divf %30, %31 : vector<32x1xf32>
    %cst_18 = arith.constant 5.000000e+00 : f32
    %33 = vector.broadcast %cst_18 : f32 to vector<32x1xf32>
    %34 = arith.mulf %32, %33 : vector<32x1xf32>
    %cst_19 = arith.constant 1.000000e+00 : f32
    %35 = vector.broadcast %cst_19 : f32 to vector<32x1xf32>
    %36 = arith.addf %34, %35 : vector<32x1xf32>
    %cst_20 = arith.constant dense<0xFF800000> : vector<32xf32>
    %37 = vector.multi_reduction <maximumf>, %26, %cst_20 [1] : vector<32x16xf32> to vector<32xf32>
    %38 = vector.shape_cast %37 : vector<32xf32> to vector<32x1xf32>
    %39 = vector.broadcast %38 : vector<32x1xf32> to vector<32x16xf32>
    %40 = arith.subf %26, %39 : vector<32x16xf32>
    %41 = math.exp %40 : vector<32x16xf32>
    %cst_21 = arith.constant dense<0.000000e+00> : vector<32xf32>
    %42 = vector.multi_reduction <add>, %41, %cst_21 [1] : vector<32x16xf32> to vector<32xf32>
    %43 = vector.shape_cast %42 : vector<32xf32> to vector<32x1xf32>
    %44 = vector.broadcast %43 : vector<32x1xf32> to vector<32x16xf32>
    %45 = arith.divf %41, %44 : vector<32x16xf32>
    %46 = tpu.concatenate %45, %26, %36 in 1 : vector<32x16xf32>, vector<32x16xf32>, vector<32x1xf32> -> vector<32x33xf32>
    %c0_22 = arith.constant 0 : index
    %c0_23 = arith.constant 0 : index
    %47 = vector.load %arg8[%c0_22, %c0_23] : memref<32x33xf32, #tpu.memory_space<vmem>>, vector<32x33xf32>
    tpu.vector_store %arg8[%c0_22, %c0_23], %46 {strides = array<i32>} : memref<32x33xf32, #tpu.memory_space<vmem>>, vector<32x33xf32>,
    return
  }
  func.func @transform_0(%arg0: i32) -> (i32, i32) {
    %c0_i32 = arith.constant 0 : i32
    %c0_i32_0 = arith.constant 0 : i32
    return %arg0, %c0_i32 : i32, i32
  }
  func.func @transform_1(%arg0: i32) -> (i32, i32) {
    %c0_i32 = arith.constant 0 : i32
    %c0_i32_0 = arith.constant 0 : i32
    %c0_i32_1 = arith.constant 0 : i32
    return %c0_i32, %c0_i32_0 : i32, i32
  }
  func.func @transform_2(%arg0: i32) -> (i32, i32) {
    %c0_i32 = arith.constant 0 : i32
    %c0_i32_0 = arith.constant 0 : i32
    %c0_i32_1 = arith.constant 0 : i32
    return %c0_i32, %c0_i32_0 : i32, i32
  }
  func.func @transform_3(%arg0: i32) -> (i32, i32) {
    %c0_i32 = arith.constant 0 : i32
    %c0_i32_0 = arith.constant 0 : i32
    %c0_i32_1 = arith.constant 0 : i32
    return %c0_i32, %c0_i32_0 : i32, i32
  }
  func.func @transform_4(%arg0: i32) -> (i32, i32) {
    %c0_i32 = arith.constant 0 : i32
    %c0_i32_0 = arith.constant 0 : i32
    %c0_i32_1 = arith.constant 0 : i32
    return %c0_i32, %c0_i32_0 : i32, i32
  }
  func.func @transform_5(%arg0: i32) -> (i32, i32) {
    %c0_i32 = arith.constant 0 : i32
    %c0_i32_0 = arith.constant 0 : i32
    %c0_i32_1 = arith.constant 0 : i32
    return %c0_i32, %c0_i32_0 : i32, i32
  }
  func.func @transform_6(%arg0: i32) -> (i32, i32) {
    %c0_i32 = arith.constant 0 : i32
    %c0_i32_0 = arith.constant 0 : i32
    %c0_i32_1 = arith.constant 0 : i32
    return %c0_i32, %c0_i32_0 : i32, i32
  }
  func.func @transform_7(%arg0: i32) -> (i32, i32) {
    %c0_i32 = arith.constant 0 : i32
    %c0_i32_0 = arith.constant 0 : i32
    return %arg0, %c0_i32 : i32, i32
  }
}

</mosaic_0001>

<llo_original>
// kernel: tpu_custom_call.1
$region0: #{tpu_custom_call.1}
  #allocation0 [shape = 'u32[]', space=smem, size = 0x4, offset = 0x4, fixed_abs, tag = 'smem constant byte address 0x4 - core index']
  #allocation1 [shape = 'u32[144,128]{1,0:T(1,128)}', space=vmem, size = 0x12000, scoped, tag = 'internal scratch']
  %s0 = inlined_call_operand.vmem [shape: f32[64,16], index: 0, kind: input, shape index: {}]
  %s1 = inlined_call_operand.vmem [shape: f32[16,32], index: 1, kind: input, shape index: {}]
  %s2 = inlined_call_operand.vmem [shape: f32[1,32], index: 2, kind: input, shape index: {}]
  %s3 = inlined_call_operand.vmem [shape: f32[32,32], index: 3, kind: input, shape index: {}]
  %s4 = inlined_call_operand.vmem [shape: f32[1,32], index: 4, kind: input, shape index: {}]
  %s5 = inlined_call_operand.vmem [shape: f32[32,17], index: 5, kind: input, shape index: {}]
  %s6 = inlined_call_operand.vmem [shape: f32[1,17], index: 6, kind: input, shape index: {}]
  %s7 = inlined_call_operand.vmem [shape: f32[64,33], index: 7, kind: output, shape index: {}]
  %s8 = sld [smem:[#allocation0]]
  $region61: #{tpu_custom_call.1} parent=0
    _
  %s10 = ssub.s32 1, %s8
  %s11 = scalar_select 0, %s10, %s8
  loop: start=0, step=1, limit=4
  $region2: #{tpu_custom_call.1} parent=0 // loop_pre_header
    _
  $region3: #{tpu_custom_call.1} parent=0 // loop_header
    %s13 = sphi 0, %s17
    %p14 = scmp.ge.s32.totalorder %s13, 4
    %s23 = sphi 0, %s25
    %s26 = sphi 0, %s23
    %s27 = sphi 0, %s26
    %s43 = sphi 0, %s27
    %s47 = sphi 0, %s47
    %s49 = sphi 0, %s47
    %s50 = sphi 0, %s49
    %s64 = sphi 0, %s50
    %s68 = sphi 0, %s68
    %s70 = sphi 0, %s68
    %s71 = sphi 0, %s70
    %s85 = sphi 0, %s71
    %s89 = sphi 0, %s89
    %s91 = sphi 0, %s89
    %s92 = sphi 0, %s91
    %s106 = sphi 0, %s92
    %s110 = sphi 0, %s110
    %s112 = sphi 0, %s110
    %s113 = sphi 0, %s112
    %s127 = sphi 0, %s113
    %s131 = sphi 0, %s131
    %s133 = sphi 0, %s131
    %s134 = sphi 0, %s133
    %s148 = sphi 0, %s134
    %s152 = sphi 0, %s152
    %s154 = sphi 0, %s152
    %s155 = sphi 0, %s154
    %s169 = sphi 0, %s155
    %s175 = sphi 0, %s177
    %s178 = sphi 0, %s175
    %s179 = sphi 0, %s178
    %s195 = sphi 0, %s179
  $region4: #{tpu_custom_call.1} parent=0 // loop_header_branch
    %16 = sbr.rel (%p14) target = $region8
  $region5: #{tpu_custom_call.1} parent=0 // loop_body
    %s18 = ssub.s32 %s13, 1
    %s19 = ssub.s32 %s13, 2
    %s20 = sadd.s32 %s13, 1
    %s21 = ssub.s32 %s13, %s20
    %p22 = scmp.eq.s32.totalorder %s21, 0
    %s24 = sadd.s32 %s23, 1
    %s25 = scalar_select %p22, %s23, %s24
    %p28 = pneg %p22
    %p29 = scmp.eq.s32.totalorder %s13, 1
    %p30 = por %p28, %p29
    %p31 = scmp.ne.s32.totalorder %s23, %s26
    %p32 = scmp.eq.s32.totalorder %s13, 0
    %p33 = por %p31, %p32
    %p34 = scmp.ne.s32.totalorder %s23, %s26
    %p35 = scmp.eq.s32.totalorder %s18, 1
    %p36 = por %p34, %p35
    %p37 = scmp.ne.s32.totalorder %s26, %s27
    %p38 = scmp.eq.s32.totalorder %s18, 0
    %p39 = por %p37, %p38
    %p40 = scmp.ne.s32.totalorder %s26, %s27
    %p41 = scmp.eq.s32.totalorder %s19, 1
    %p42 = por %p40, %p41
    %p44 = scmp.ne.s32.totalorder %s27, %s43
    %p45 = scmp.eq.s32.totalorder %s19, 0
    %p46 = por %p44, %p45
    %s48 = sadd.s32 %s47, 1
    %p51 = scmp.eq.s32.totalorder %s13, 1
    %p52 = scmp.ne.s32.totalorder %s47, %s49
    %p53 = scmp.eq.s32.totalorder %s13, 0
    %p54 = por %p52, %p53
    %p55 = scmp.ne.s32.totalorder %s47, %s49
    %p56 = scmp.eq.s32.totalorder %s18, 1
    %p57 = por %p55, %p56
    %p58 = scmp.ne.s32.totalorder %s49, %s50
    %p59 = scmp.eq.s32.totalorder %s18, 0
    %p60 = por %p58, %p59
    %p61 = scmp.ne.s32.totalorder %s49, %s50
    %p62 = scmp.eq.s32.totalorder %s19, 1
    %p63 = por %p61, %p62
    %p65 = scmp.ne.s32.totalorder %s50, %s64
    %p66 = scmp.eq.s32.totalorder %s19, 0
    %p67 = por %p65, %p66
    %s69 = sadd.s32 %s68, 1
    %p72 = scmp.eq.s32.totalorder %s13, 1
    %p73 = scmp.ne.s32.totalorder %s68, %s70
    %p74 = scmp.eq.s32.totalorder %s13, 0
    %p75 = por %p73, %p74
    %p76 = scmp.ne.s32.totalorder %s68, %s70
    %p77 = scmp.eq.s32.totalorder %s18, 1
    %p78 = por %p76, %p77
    %p79 = scmp.ne.s32.totalorder %s70, %s71
    %p80 = scmp.eq.s32.totalorder %s18, 0
    %p81 = por %p79, %p80
    %p82 = scmp.ne.s32.totalorder %s70, %s71
    %p83 = scmp.eq.s32.totalorder %s19, 1
    %p84 = por %p82, %p83
    %p86 = scmp.ne.s32.totalorder %s71, %s85
    %p87 = scmp.eq.s32.totalorder %s19, 0
    %p88 = por %p86, %p87
    %s90 = sadd.s32 %s89, 1
    %p93 = scmp.eq.s32.totalorder %s13, 1
    %p94 = scmp.ne.s32.totalorder %s89, %s91
    %p95 = scmp.eq.s32.totalorder %s13, 0
    %p96 = por %p94, %p95
    %p97 = scmp.ne.s32.totalorder %s89, %s91
    %p98 = scmp.eq.s32.totalorder %s18, 1
    %p99 = por %p97, %p98
    %p100 = scmp.ne.s32.totalorder %s91, %s92
    %p101 = scmp.eq.s32.totalorder %s18, 0
    %p102 = por %p100, %p101
    %p103 = scmp.ne.s32.totalorder %s91, %s92
    %p104 = scmp.eq.s32.totalorder %s19, 1
    %p105 = por %p103, %p104
    %p107 = scmp.ne.s32.totalorder %s92, %s106
    %p108 = scmp.eq.s32.totalorder %s19, 0
    %p109 = por %p107, %p108
    %s111 = sadd.s32 %s110, 1
    %p114 = scmp.eq.s32.totalorder %s13, 1
    %p115 = scmp.ne.s32.totalorder %s110, %s112
    %p116 = scmp.eq.s32.totalorder %s13, 0
    %p117 = por %p115, %p116
    %p118 = scmp.ne.s32.totalorder %s110, %s112
    %p119 = scmp.eq.s32.totalorder %s18, 1
    %p120 = por %p118, %p119
    %p121 = scmp.ne.s32.totalorder %s112, %s113
    %p122 = scmp.eq.s32.totalorder %s18, 0
    %p123 = por %p121, %p122
    %p124 = scmp.ne.s32.totalorder %s112, %s113
    %p125 = scmp.eq.s32.totalorder %s19, 1
    %p126 = por %p124, %p125
    %p128 = scmp.ne.s32.totalorder %s113, %s127
    %p129 = scmp.eq.s32.totalorder %s19, 0
    %p130 = por %p128, %p129
    %s132 = sadd.s32 %s131, 1
    %p135 = scmp.eq.s32.totalorder %s13, 1
    %p136 = scmp.ne.s32.totalorder %s131, %s133
    %p137 = scmp.eq.s32.totalorder %s13, 0
    %p138 = por %p136, %p137
    %p139 = scmp.ne.s32.totalorder %s131, %s133
    %p140 = scmp.eq.s32.totalorder %s18, 1
    %p141 = por %p139, %p140
    %p142 = scmp.ne.s32.totalorder %s133, %s134
    %p143 = scmp.eq.s32.totalorder %s18, 0
    %p144 = por %p142, %p143
    %p145 = scmp.ne.s32.totalorder %s133, %s134
    %p146 = scmp.eq.s32.totalorder %s19, 1
    %p147 = por %p145, %p146
    %p149 = scmp.ne.s32.totalorder %s134, %s148
    %p150 = scmp.eq.s32.totalorder %s19, 0
    %p151 = por %p149, %p150
    %s153 = sadd.s32 %s152, 1
    %p156 = scmp.eq.s32.totalorder %s13, 1
    %p157 = scmp.ne.s32.totalorder %s152, %s154
    %p158 = scmp.eq.s32.totalorder %s13, 0
    %p159 = por %p157, %p158
    %p160 = scmp.ne.s32.totalorder %s152, %s154
    %p161 = scmp.eq.s32.totalorder %s18, 1
    %p162 = por %p160, %p161
    %p163 = scmp.ne.s32.totalorder %s154, %s155
    %p164 = scmp.eq.s32.totalorder %s18, 0
    %p165 = por %p163, %p164
    %p166 = scmp.ne.s32.totalorder %s154, %s155
    %p167 = scmp.eq.s32.totalorder %s19, 1
    %p168 = por %p166, %p167
    %p170 = scmp.ne.s32.totalorder %s155, %s169
    %p171 = scmp.eq.s32.totalorder %s19, 0
    %p172 = por %p170, %p171
    %s173 = ssub.s32 %s13, %s20
    %p174 = scmp.eq.s32.totalorder %s173, 0
    %s176 = sadd.s32 %s175, 1
    %s177 = scalar_select %p174, %s175, %s176
    %p180 = pneg %p174
    %p181 = scmp.eq.s32.totalorder %s13, 1
    %p182 = por %p180, %p181
    %p183 = scmp.ne.s32.totalorder %s175, %s178
    %p184 = scmp.eq.s32.totalorder %s13, 0
    %p185 = por %p183, %p184
    %p186 = scmp.ne.s32.totalorder %s175, %s178
    %p187 = scmp.eq.s32.totalorder %s18, 1
    %p188 = por %p186, %p187
    %p189 = scmp.ne.s32.totalorder %s178, %s179
    %p190 = scmp.eq.s32.totalorder %s18, 0
    %p191 = por %p189, %p190
    %p192 = scmp.ne.s32.totalorder %s178, %s179
    %p193 = scmp.eq.s32.totalorder %s19, 1
    %p194 = por %p192, %p193
    %p196 = scmp.ne.s32.totalorder %s179, %s195
    %p197 = scmp.eq.s32.totalorder %s19, 0
    %p198 = por %p196, %p197
    %p199 = scmp.le.s32.totalorder 1, %s13
    %p200 = scmp.lt.s32.totalorder %s13, 3
    %p201 = pnand %p199, %p200
    %p202 = pneg %p201
    // Predicated region
    $region9: #{tpu_custom_call.1} parent=5 // pred_check
      _
    $region10: #{tpu_custom_call.1} parent=5 // pred_check_branch
      %204 = sbr.rel (%p201) target = $region12
    $region11: #{tpu_custom_call.1} parent=5 // pred_region
      %s205 = ssub.s32 %s13, 1
      // Predicated region
      $region13: #{tpu_custom_call.1} parent=11 // pred_check
        %p206 = pneg %p60
      $region14: #{tpu_custom_call.1} parent=11 // pred_check_branch
        %208 = sbr.rel (%p206) target = $region16
      $region15: #{tpu_custom_call.1} parent=11 // pred_region
        _
      $region16: #{tpu_custom_call.1} parent=11 // pred_fallthru
        _
      // Predicated region
      $region17: #{tpu_custom_call.1} parent=11 // pred_check
        %p209 = pneg %p81
      $region18: #{tpu_custom_call.1} parent=11 // pred_check_branch
        %211 = sbr.rel (%p209) target = $region20
      $region19: #{tpu_custom_call.1} parent=11 // pred_region
        _
      $region20: #{tpu_custom_call.1} parent=11 // pred_fallthru
        _
      // Predicated region
      $region21: #{tpu_custom_call.1} parent=11 // pred_check
        %p212 = pneg %p102
      $region22: #{tpu_custom_call.1} parent=11 // pred_check_branch
        %214 = sbr.rel (%p212) target = $region24
      $region23: #{tpu_custom_call.1} parent=11 // pred_region
        _
      $region24: #{tpu_custom_call.1} parent=11 // pred_fallthru
        _
      // Predicated region
      $region25: #{tpu_custom_call.1} parent=11 // pred_check
        %p215 = pneg %p123
      $region26: #{tpu_custom_call.1} parent=11 // pred_check_branch
        %217 = sbr.rel (%p215) target = $region28
      $region27: #{tpu_custom_call.1} parent=11 // pred_region
        _
      $region28: #{tpu_custom_call.1} parent=11 // pred_fallthru
        _
      // Predicated region
      $region29: #{tpu_custom_call.1} parent=11 // pred_check
        %p218 = pneg %p144
      $region30: #{tpu_custom_call.1} parent=11 // pred_check_branch
        %220 = sbr.rel (%p218) target = $region32
      $region31: #{tpu_custom_call.1} parent=11 // pred_region
        _
      $region32: #{tpu_custom_call.1} parent=11 // pred_fallthru
        _
      // Predicated region
      $region33: #{tpu_custom_call.1} parent=11 // pred_check
        %p221 = pneg %p165
      $region34: #{tpu_custom_call.1} parent=11 // pred_check_branch
        %223 = sbr.rel (%p221) target = $region36
      $region35: #{tpu_custom_call.1} parent=11 // pred_region
        _
      $region36: #{tpu_custom_call.1} parent=11 // pred_fallthru
        _
    $region12: #{tpu_custom_call.1} parent=5 // pred_fallthru
      _
    %p224 = scmp.lt.s32.totalorder %s13, 2
    // Predicated region
    $region37: #{tpu_custom_call.1} parent=5 // pred_check
      %p225 = pneg %p224
    $region38: #{tpu_custom_call.1} parent=5 // pred_check_branch
      %227 = sbr.rel (%p225) target = $region40
    $region39: #{tpu_custom_call.1} parent=5 // pred_region
      // Predicated region
      $region41: #{tpu_custom_call.1} parent=39 // pred_check
        %p228 = pneg %p33
      $region42: #{tpu_custom_call.1} parent=39 // pred_check_branch
        %230 = sbr.rel (%p228) target = $region44
      $region43: #{tpu_custom_call.1} parent=39 // pred_region
        %s231 = smul.u32 4, %s13
        %p232 = scmp.lt.s32.totalorder %s231, 7
        %s233 = scalar_select %p232, %s231, 7
        %s234 = smul.addr %s233, 8
        %s235 = scalar_lea.vmem %s0, %s234
        %s236 = smul.u32 4, %s13
      $region44: #{tpu_custom_call.1} parent=39 // pred_fallthru
        _
    $region40: #{tpu_custom_call.1} parent=5 // pred_fallthru
      _
    %p237 = scmp.le.s32.totalorder 1, %s13
    %p238 = scmp.lt.s32.totalorder %s13, 3
    %p239 = pnand %p237, %p238
    %p240 = pneg %p239
    // Predicated region
    $region45: #{tpu_custom_call.1} parent=5 // pred_check
      _
    $region46: #{tpu_custom_call.1} parent=5 // pred_check_branch
      %242 = sbr.rel (%p239) target = $region48
    $region47: #{tpu_custom_call.1} parent=5 // pred_region
      %s243 = ssub.s32 %s13, 1
      %s244 = smul.u32 4, %s18
      %p245 = scmp.lt.s32.totalorder %s244, 7
      %s246 = scalar_select %p245, %s244, 7
      %s247 = smul.addr %s246, 8
      %s248 = scalar_lea.vmem %s0, %s247
      %p249 = pneg %p39
      %p250 = pneg %p36
      %p251 = pneg %p60
      %p252 = pneg %p57
      %p253 = pneg %p81
      %p254 = pneg %p78
      %p255 = pneg %p102
      %p256 = pneg %p99
      %p257 = pneg %p123
      %p258 = pneg %p120
      %p259 = pneg %p144
      %p260 = pneg %p141
      %p261 = pneg %p165
      %p262 = pneg %p162
      %p263 = pneg %p191
      %p264 = pneg %p188
      %s265 = smul.u32 4, %s18
      %p266 = scmp.lt.s32.totalorder %s265, 7
      %s267 = scalar_select %p266, %s265, 7
      %s268 = smul.addr %s267, 8
      %s269 = scalar_lea.vmem %s7, %s268
      %s270 = smul.u32 4, %s18
      %p271 = scmp.lt.s32.totalorder %s270, 7
      %s272 = scalar_select %p271, %s270, 7
      %s273 = smul.addr %s272, 8
      %s274 = scalar_lea.vmem %s0, %s273
      %s275 = smul.u32 4, %s18
      %s276 = smul.u32 4, %s18
      %p277 = scmp.lt.s32.totalorder %s276, 7
      %s278 = scalar_select %p277, %s276, 7
      %s279 = smul.addr %s278, 8
      %s280 = scalar_lea.vmem %s7, %s279
      %s281 = smul.u32 4, %s18
      %v282 = vld [vmem:[%s274] sm:$0xff]
      %v283 = vld [vmem:[%s274 + $0x8] sm:$0xff]
      %v284 = vld [vmem:[%s274 + $0x10] sm:$0xff]
      %v285 = vld [vmem:[%s274 + $0x18] sm:$0xff]
      %v286 = vld [vmem:[%s1] sm:$0xff]
      %v287 = vld [vmem:[%s1 + $0x8] sm:$0xff]
      %v288 = vld [vmem:[%s2] sm:$0x1]
      %v290 = vlaneseq
      %v291 = vshrl.u32 %v290, 7
      %v292 = vsub.s32 0, %v291
      %v293 = vrot.slane %v288, %v292
      %vm295 = vcmask 130048
      %v297 = vsel %vm295, %v282, 0
      %v300 = vsel %vm295, %v283, 0
      %v303 = vsel %vm295, %v284, 0
      %v306 = vsel %vm295, %v285, 0
      %308 = vmatprep.subr.mxu0 0.0
      %309 = vmatpush1.msra.mxu0 0.0
      %310 = vmatprep.subr.mxu0 0.0
      %311 = vmatpush1.msra.mxu0 0.0
      %312 = vmatprep.subr.mxu0 0.0
      %313 = vmatpush1.msra.mxu0 0.0
      %314 = vmatprep.subr.mxu0 0.0
      %315 = vmatpush1.msra.mxu0 0.0
      %316 = vmatprep.subr.mxu0 0.0
      %317 = vmatpush1.msra.mxu0 0.0
      %318 = vmatprep.subr.mxu0 0.0
      %319 = vmatpush1.msra.mxu0 0.0
      %320 = vmatprep.subr.mxu0 0.0
      %321 = vmatpush1.msra.mxu0 0.0
      %322 = vmatprep.subr.mxu0 0.0
      %323 = vmatpush1.msra.mxu0 0.0
      %324 = vmatprep.subr.mxu0 0.0
      %325 = vmatpush1.msra.mxu0 0.0
      %326 = vmatprep.subr.mxu0 0.0
      %327 = vmatpush1.msra.mxu0 0.0
      %328 = vmatprep.subr.mxu0 0.0
      %329 = vmatpush1.msra.mxu0 0.0
      %330 = vmatprep.subr.mxu0 0.0
      %331 = vmatpush1.msra.mxu0 0.0
      %332 = vmatprep.subr.mxu0 0.0
      %333 = vmatpush1.msra.mxu0 0.0
      %334 = vmatprep.subr.mxu0 0.0
      %335 = vmatpush1.msra.mxu0 0.0
      %336 = vmatprep.subr.mxu0 0.0
      %337 = vmatpush1.msra.mxu0 %v287
      %338 = vmatprep.subr.mxu0 0.0
      %339 = vmatpush1.msra.mxu0 %v286
      %340 = vmatprep.subr.mxu0 0.0
      %341 = vmatpush2.msra.mxu0 0.0
      %342 = vmatprep.subr.mxu0 0.0
      %343 = vmatpush2.msra.mxu0 0.0
      %344 = vmatprep.subr.mxu0 0.0
      %345 = vmatpush2.msra.mxu0 0.0
      %346 = vmatprep.subr.mxu0 0.0
      %347 = vmatpush2.msra.mxu0 0.0
      %348 = vmatprep.subr.mxu0 0.0
      %349 = vmatpush2.msra.mxu0 0.0
      %350 = vmatprep.subr.mxu0 0.0
      %351 = vmatpush2.msra.mxu0 0.0
      %352 = vmatprep.subr.mxu0 0.0
      %353 = vmatpush2.msra.mxu0 0.0
      %354 = vmatprep.subr.mxu0 0.0
      %355 = vmatpush2.msra.mxu0 0.0
      %356 = vmatprep.subr.mxu0 0.0
      %357 = vmatpush2.msra.mxu0 0.0
      %358 = vmatprep.subr.mxu0 0.0
      %359 = vmatpush2.msra.mxu0 0.0
      %360 = vmatprep.subr.mxu0 0.0
      %361 = vmatpush2.msra.mxu0 0.0
      %362 = vmatprep.subr.mxu0 0.0
      %363 = vmatpush2.msra.mxu0 0.0
      %364 = vmatprep.subr.mxu0 0.0
      %365 = vmatpush2.msra.mxu0 0.0
      %366 = vmatprep.subr.mxu0 0.0
      %367 = vmatpush2.msra.mxu0 0.0
      %368 = vmatprep.subr.mxu0 0.0
      %369 = vmatpush2.msra.mxu0 0.0
      %370 = vmatprep.subr.mxu0 0.0
      %371 = vmatpush2.msra.mxu0 0.0
      %372 = vmatprep.mubr.f32.mxu0 0.0
      %373 = vmatmul.mubr.f32.gmra.mxu0 %v297
      %v374 = vpop.f32.mrf.mxu0
      %v375 = vadd.f32 %v293, %v374
      %v376 = vpop.f32.mrf.mxu0
      %377 = vmatprep.mubr.f32.mxu0 0.0
      %378 = vmatmul.mubr.f32.gmra.mxu0 %v300
      %v379 = vpop.f32.mrf.mxu0
      %v380 = vadd.f32 %v293, %v379
      %v381 = vpop.f32.mrf.mxu0
      %382 = vmatprep.mubr.f32.mxu0 0.0
      %383 = vmatmul.mubr.f32.gmra.mxu0 %v303
      %v384 = vpop.f32.mrf.mxu0
      %v385 = vadd.f32 %v293, %v384
      %v386 = vpop.f32.mrf.mxu0
      %387 = vmatprep.mubr.f32.mxu0 0.0
      %388 = vmatmul.mubr.f32.gmra.mxu0 %v306
      %v389 = vpop.f32.mrf.mxu0
      %v390 = vadd.f32 %v293, %v389
      %v391 = vpop.f32.mrf.mxu0
      %392 = vdwg.mxu0
      %v393 = vxor.u32 %v375, 2147483648
      %v394 = vxor.u32 %v380, 2147483648
      %v395 = vxor.u32 %v385, 2147483648
      %v396 = vxor.u32 %v390, 2147483648
      %v397 = vmul.f32 %v393, 1.442695
      %v398 = vpow.pop %v397
      %v399 = vmul.f32 %v394, 1.442695
      %v400 = vpow.pop %v399
      %v401 = vmul.f32 %v395, 1.442695
      %v402 = vpow.pop %v401
      %v403 = vmul.f32 %v396, 1.442695
      %v404 = vpow.pop %v403
      %v405 = vadd.f32 %v398, 1.0
      %v406 = vadd.f32 %v400, 1.0
      %v407 = vadd.f32 %v402, 1.0
      %v408 = vadd.f32 %v404, 1.0
      %v409 = vrcp.pop %v405
      %v410 = vmul.f32 1.0, %v409
      %v411 = vrcp.pop %v406
      %v412 = vmul.f32 1.0, %v411
      %v413 = vrcp.pop %v407
      %v414 = vmul.f32 1.0, %v413
      %v415 = vrcp.pop %v408
      %v416 = vmul.f32 1.0, %v415
      %v417 = vld [vmem:[%s3] sm:$0xff]
      %v418 = vld [vmem:[%s3 + $0x8] sm:$0xff]
      %v419 = vld [vmem:[%s3 + $0x10] sm:$0xff]
      %v420 = vld [vmem:[%s3 + $0x18] sm:$0xff]
      %v421 = vld [vmem:[%s4] sm:$0x1]
      %v423 = vlaneseq
      %v424 = vshrl.u32 %v423, 7
      %v425 = vsub.s32 0, %v424
      %v426 = vrot.slane %v421, %v425
      %vm428 = vcmask 261120
      %v430 = vsel %vm428, %v410, 0
      %v433 = vsel %vm428, %v412, 0
      %v436 = vsel %vm428, %v414, 0
      %v439 = vsel %vm428, %v416, 0
      %441 = vmatprep.subr.mxu0 0.0
      %442 = vmatpush1.msra.mxu0 0.0
      %443 = vmatprep.subr.mxu0 0.0
      %444 = vmatpush1.msra.mxu0 0.0
      %445 = vmatprep.subr.mxu0 0.0
      %446 = vmatpush1.msra.mxu0 0.0
      %447 = vmatprep.subr.mxu0 0.0
      %448 = vmatpush1.msra.mxu0 0.0
      %449 = vmatprep.subr.mxu0 0.0
      %450 = vmatpush1.msra.mxu0 0.0
      %451 = vmatprep.subr.mxu0 0.0
      %452 = vmatpush1.msra.mxu0 0.0
      %453 = vmatprep.subr.mxu0 0.0
      %454 = vmatpush1.msra.mxu0 0.0
      %455 = vmatprep.subr.mxu0 0.0
      %456 = vmatpush1.msra.mxu0 0.0
      %457 = vmatprep.subr.mxu0 0.0
      %458 = vmatpush1.msra.mxu0 0.0
      %459 = vmatprep.subr.mxu0 0.0
      %460 = vmatpush1.msra.mxu0 0.0
      %461 = vmatprep.subr.mxu0 0.0
      %462 = vmatpush1.msra.mxu0 0.0
      %463 = vmatprep.subr.mxu0 0.0
      %464 = vmatpush1.msra.mxu0 0.0
      %465 = vmatprep.subr.mxu0 0.0
      %466 = vmatpush1.msra.mxu0 %v420
      %467 = vmatprep.subr.mxu0 0.0
      %468 = vmatpush1.msra.mxu0 %v419
      %469 = vmatprep.subr.mxu0 0.0
      %470 = vmatpush1.msra.mxu0 %v418
      %471 = vmatprep.subr.mxu0 0.0
      %472 = vmatpush1.msra.mxu0 %v417
      %473 = vmatprep.subr.mxu0 0.0
      %474 = vmatpush2.msra.mxu0 0.0
      %475 = vmatprep.subr.mxu0 0.0
      %476 = vmatpush2.msra.mxu0 0.0
      %477 = vmatprep.subr.mxu0 0.0
      %478 = vmatpush2.msra.mxu0 0.0
      %479 = vmatprep.subr.mxu0 0.0
      %480 = vmatpush2.msra.mxu0 0.0
      %481 = vmatprep.subr.mxu0 0.0
      %482 = vmatpush2.msra.mxu0 0.0
      %483 = vmatprep.subr.mxu0 0.0
      %484 = vmatpush2.msra.mxu0 0.0
      %485 = vmatprep.subr.mxu0 0.0
      %486 = vmatpush2.msra.mxu0 0.0
      %487 = vmatprep.subr.mxu0 0.0
      %488 = vmatpush2.msra.mxu0 0.0
      %489 = vmatprep.subr.mxu0 0.0
      %490 = vmatpush2.msra.mxu0 0.0
      %491 = vmatprep.subr.mxu0 0.0
      %492 = vmatpush2.msra.mxu0 0.0
      %493 = vmatprep.subr.mxu0 0.0
      %494 = vmatpush2.msra.mxu0 0.0
      %495 = vmatprep.subr.mxu0 0.0
      %496 = vmatpush2.msra.mxu0 0.0
      %497 = vmatprep.subr.mxu0 0.0
      %498 = vmatpush2.msra.mxu0 0.0
      %499 = vmatprep.subr.mxu0 0.0
      %500 = vmatpush2.msra.mxu0 0.0
      %501 = vmatprep.subr.mxu0 0.0
      %502 = vmatpush2.msra.mxu0 0.0
      %503 = vmatprep.subr.mxu0 0.0
      %504 = vmatpush2.msra.mxu0 0.0
      %505 = vmatprep.mubr.f32.mxu0 0.0
      %506 = vmatmul.mubr.f32.gmra.mxu0 %v430
      %v507 = vpop.f32.mrf.mxu0
      %v508 = vadd.f32 %v426, %v507
      %v509 = vpop.f32.mrf.mxu0
      %510 = vmatprep.mubr.f32.mxu0 0.0
      %511 = vmatmul.mubr.f32.gmra.mxu0 %v433
      %v512 = vpop.f32.mrf.mxu0
      %v513 = vadd.f32 %v426, %v512
      %v514 = vpop.f32.mrf.mxu0
      %515 = vmatprep.mubr.f32.mxu0 0.0
      %516 = vmatmul.mubr.f32.gmra.mxu0 %v436
      %v517 = vpop.f32.mrf.mxu0
      %v518 = vadd.f32 %v426, %v517
      %v519 = vpop.f32.mrf.mxu0
      %520 = vmatprep.mubr.f32.mxu0 0.0
      %521 = vmatmul.mubr.f32.gmra.mxu0 %v439
      %v522 = vpop.f32.mrf.mxu0
      %v523 = vadd.f32 %v426, %v522
      %v524 = vpop.f32.mrf.mxu0
      %525 = vdwg.mxu0
      %v526 = vxor.u32 %v508, 2147483648
      %v527 = vxor.u32 %v513, 2147483648
      %v528 = vxor.u32 %v518, 2147483648
      %v529 = vxor.u32 %v523, 2147483648
      %v530 = vmul.f32 %v526, 1.442695
      %v531 = vpow.pop %v530
      %v532 = vmul.f32 %v527, 1.442695
      %v533 = vpow.pop %v532
      %v534 = vmul.f32 %v528, 1.442695
      %v535 = vpow.pop %v534
      %v536 = vmul.f32 %v529, 1.442695
      %v537 = vpow.pop %v536
      %v538 = vadd.f32 %v531, 1.0
      %v539 = vadd.f32 %v533, 1.0
      %v540 = vadd.f32 %v535, 1.0
      %v541 = vadd.f32 %v537, 1.0
      %v542 = vrcp.pop %v538
      %v543 = vmul.f32 1.0, %v542
      %v544 = vrcp.pop %v539
      %v545 = vmul.f32 1.0, %v544
      %v546 = vrcp.pop %v540
      %v547 = vmul.f32 1.0, %v546
      %v548 = vrcp.pop %v541
      %v549 = vmul.f32 1.0, %v548
      %v550 = vld [vmem:[%s5] sm:$0xff]
      %v551 = vld [vmem:[%s5 + $0x8] sm:$0xff]
      %v552 = vld [vmem:[%s5 + $0x10] sm:$0xff]
      %v553 = vld [vmem:[%s5 + $0x18] sm:$0xff]
      %v554 = vld [vmem:[%s6] sm:$0x1]
      %v556 = vlaneseq
      %v557 = vshrl.u32 %v556, 7
      %v558 = vsub.s32 0, %v557
      %v559 = vrot.slane %v554, %v558
      %v562 = vsel %vm428, %v543, 0
      %v565 = vsel %vm428, %v545, 0
      %v568 = vsel %vm428, %v547, 0
      %v571 = vsel %vm428, %v549, 0
      %573 = vmatprep.subr.mxu0 0.0
      %574 = vmatpush1.msra.mxu0 0.0
      %575 = vmatprep.subr.mxu0 0.0
      %576 = vmatpush1.msra.mxu0 0.0
      %577 = vmatprep.subr.mxu0 0.0
      %578 = vmatpush1.msra.mxu0 0.0
      %579 = vmatprep.subr.mxu0 0.0
      %580 = vmatpush1.msra.mxu0 0.0
      %581 = vmatprep.subr.mxu0 0.0
      %582 = vmatpush1.msra.mxu0 0.0
      %583 = vmatprep.subr.mxu0 0.0
      %584 = vmatpush1.msra.mxu0 0.0
      %585 = vmatprep.subr.mxu0 0.0
      %586 = vmatpush1.msra.mxu0 0.0
      %587 = vmatprep.subr.mxu0 0.0
      %588 = vmatpush1.msra.mxu0 0.0
      %589 = vmatprep.subr.mxu0 0.0
      %590 = vmatpush1.msra.mxu0 0.0
      %591 = vmatprep.subr.mxu0 0.0
      %592 = vmatpush1.msra.mxu0 0.0
      %593 = vmatprep.subr.mxu0 0.0
      %594 = vmatpush1.msra.mxu0 0.0
      %595 = vmatprep.subr.mxu0 0.0
      %596 = vmatpush1.msra.mxu0 0.0
      %597 = vmatprep.subr.mxu0 0.0
      %598 = vmatpush1.msra.mxu0 %v553
      %599 = vmatprep.subr.mxu0 0.0
      %600 = vmatpush1.msra.mxu0 %v552
      %601 = vmatprep.subr.mxu0 0.0
      %602 = vmatpush1.msra.mxu0 %v551
      %603 = vmatprep.subr.mxu0 0.0
      %604 = vmatpush1.msra.mxu0 %v550
      %605 = vmatprep.subr.mxu0 0.0
      %606 = vmatpush2.msra.mxu0 0.0
      %607 = vmatprep.subr.mxu0 0.0
      %608 = vmatpush2.msra.mxu0 0.0
      %609 = vmatprep.subr.mxu0 0.0
      %610 = vmatpush2.msra.mxu0 0.0
      %611 = vmatprep.subr.mxu0 0.0
      %612 = vmatpush2.msra.mxu0 0.0
      %613 = vmatprep.subr.mxu0 0.0
      %614 = vmatpush2.msra.mxu0 0.0
      %615 = vmatprep.subr.mxu0 0.0
      %616 = vmatpush2.msra.mxu0 0.0
      %617 = vmatprep.subr.mxu0 0.0
      %618 = vmatpush2.msra.mxu0 0.0
      %619 = vmatprep.subr.mxu0 0.0
      %620 = vmatpush2.msra.mxu0 0.0
      %621 = vmatprep.subr.mxu0 0.0
      %622 = vmatpush2.msra.mxu0 0.0
      %623 = vmatprep.subr.mxu0 0.0
      %624 = vmatpush2.msra.mxu0 0.0
      %625 = vmatprep.subr.mxu0 0.0
      %626 = vmatpush2.msra.mxu0 0.0
      %627 = vmatprep.subr.mxu0 0.0
      %628 = vmatpush2.msra.mxu0 0.0
      %629 = vmatprep.subr.mxu0 0.0
      %630 = vmatpush2.msra.mxu0 0.0
      %631 = vmatprep.subr.mxu0 0.0
      %632 = vmatpush2.msra.mxu0 0.0
      %633 = vmatprep.subr.mxu0 0.0
      %634 = vmatpush2.msra.mxu0 0.0
      %635 = vmatprep.subr.mxu0 0.0
      %636 = vmatpush2.msra.mxu0 0.0
      %637 = vmatprep.mubr.f32.mxu0 0.0
      %638 = vmatmul.mubr.f32.gmra.mxu0 %v562
      %v639 = vpop.f32.mrf.mxu0
      %v640 = vadd.f32 %v559, %v639
      %v641 = vpop.f32.mrf.mxu0
      %642 = vmatprep.mubr.f32.mxu0 0.0
      %643 = vmatmul.mubr.f32.gmra.mxu0 %v565
      %v644 = vpop.f32.mrf.mxu0
      %v645 = vadd.f32 %v559, %v644
      %v646 = vpop.f32.mrf.mxu0
      %647 = vmatprep.mubr.f32.mxu0 0.0
      %648 = vmatmul.mubr.f32.gmra.mxu0 %v568
      %v649 = vpop.f32.mrf.mxu0
      %v650 = vadd.f32 %v559, %v649
      %v651 = vpop.f32.mrf.mxu0
      %652 = vmatprep.mubr.f32.mxu0 0.0
      %653 = vmatmul.mubr.f32.gmra.mxu0 %v571
      %v654 = vpop.f32.mrf.mxu0
      %v655 = vadd.f32 %v559, %v654
      %v656 = vpop.f32.mrf.mxu0
      %657 = vdwg.mxu0
      %v658 = vxor.u32 %v640, 2147483648
      %v659 = vxor.u32 %v645, 2147483648
      %v660 = vxor.u32 %v650, 2147483648
      %v661 = vxor.u32 %v655, 2147483648
      %v662 = vmul.f32 %v658, 1.442695
      %v663 = vpow.pop %v662
      %v664 = vmul.f32 %v659, 1.442695
      %v665 = vpow.pop %v664
      %v666 = vmul.f32 %v660, 1.442695
      %v667 = vpow.pop %v666
      %v668 = vmul.f32 %v661, 1.442695
      %v669 = vpow.pop %v668
      %v670 = vadd.f32 %v663, 1.0
      %v671 = vadd.f32 %v665, 1.0
      %v672 = vadd.f32 %v667, 1.0
      %v673 = vadd.f32 %v669, 1.0
      %v674 = vrcp.pop %v670
      %v675 = vmul.f32 1.0, %v674
      %v676 = vrcp.pop %v671
      %v677 = vmul.f32 1.0, %v676
      %v678 = vrcp.pop %v672
      %v679 = vmul.f32 1.0, %v678
      %v680 = vrcp.pop %v673
      %v681 = vmul.f32 1.0, %v680
      %v682 = vmul.f32 %v675, 5.0
      %v683 = vmul.f32 %v677, 5.0
      %v684 = vmul.f32 %v679, 5.0
      %v685 = vmul.f32 %v681, 5.0
      %v686 = vadd.f32 %v682, 1.0
      %v687 = vadd.f32 %v683, 1.0
      %v688 = vadd.f32 %v684, 1.0
      %v689 = vadd.f32 %v685, 1.0
      %v690 = vsel %vm295, %v640, -inf
      %691 = vmax.xlane.f32.xlu0 %v690
      %v692 = vpop.xlane.xlu0 %691
      %v693 = vsel %vm295, %v645, -inf
      %694 = vmax.xlane.f32.xlu0 %v693
      %v695 = vpop.xlane.xlu0 %694
      %v696 = vsel %vm295, %v650, -inf
      %697 = vmax.xlane.f32.xlu0 %v696
      %v698 = vpop.xlane.xlu0 %697
      %v699 = vsel %vm295, %v655, -inf
      %700 = vmax.xlane.f32.xlu0 %v699
      %v701 = vpop.xlane.xlu0 %700
      %v702 = vsub.f32 %v640, %v692
      %v703 = vsub.f32 %v645, %v695
      %v704 = vsub.f32 %v650, %v698
      %v705 = vsub.f32 %v655, %v701
      %v706 = vmul.f32 %v702, 1.442695
      %v707 = vpow.pop %v706
      %v708 = vmul.f32 %v703, 1.442695
      %v709 = vpow.pop %v708
      %v710 = vmul.f32 %v704, 1.442695
      %v711 = vpow.pop %v710
      %v712 = vmul.f32 %v705, 1.442695
      %v713 = vpow.pop %v712
      %v714 = vsel %vm295, %v707, 0.0
      %715 = vadd.xlane.f32.xlu0 %v714
      %v716 = vpop.xlane.xlu0 %715
      %v717 = vsel %vm295, %v709, 0.0
      %718 = vadd.xlane.f32.xlu0 %v717
      %v719 = vpop.xlane.xlu0 %718
      %v720 = vsel %vm295, %v711, 0.0
      %721 = vadd.xlane.f32.xlu0 %v720
      %v722 = vpop.xlane.xlu0 %721
      %v723 = vsel %vm295, %v713, 0.0
      %724 = vadd.xlane.f32.xlu0 %v723
      %v725 = vpop.xlane.xlu0 %724
      %v726 = vrcp.pop %v716
      %v727 = vmul.f32 %v707, %v726
      %v728 = vrcp.pop %v719
      %v729 = vmul.f32 %v709, %v728
      %v730 = vrcp.pop %v722
      %v731 = vmul.f32 %v711, %v730
      %v732 = vrcp.pop %v725
      %v733 = vmul.f32 %v713, %v732
      %738 = vrot.lane.b32.xlu0 %v640, 16
      %v739 = vpop.permute.xlu0 %738
      %740 = vrot.lane.b32.xlu0 %v645, 16
      %v741 = vpop.permute.xlu0 %740
      %742 = vrot.lane.b32.xlu0 %v650, 16
      %v743 = vpop.permute.xlu0 %742
      %744 = vrot.lane.b32.xlu0 %v655, 16
      %v745 = vpop.permute.xlu0 %744
      %754 = vrot.lane.b32.xlu0 %v686, 16
      %v755 = vpop.permute.xlu0 %754
      %756 = vrot.lane.b32.xlu0 %v687, 16
      %v757 = vpop.permute.xlu0 %756
      %758 = vrot.lane.b32.xlu0 %v688, 16
      %v759 = vpop.permute.xlu0 %758
      %760 = vrot.lane.b32.xlu0 %v689, 16
      %v761 = vpop.permute.xlu0 %760
      %v766 = vsel %vm295, %v727, %v739
      %v767 = vsel %vm295, %v729, %v741
      %v768 = vsel %vm295, %v731, %v743
      %v769 = vsel %vm295, %v733, %v745
      %v770 = vsel %vm428, %v766, %v755
      %v771 = vsel %vm428, %v767, %v757
      %v772 = vsel %vm428, %v768, %v759
      %v773 = vsel %vm428, %v769, %v761
      %vm774 = vcmask 269312
      %775 = vst.msk [vmem:[%s280] sm:$0xff] %vm774, %v770
      %776 = vst.msk [vmem:[%s280 + $0x8] sm:$0xff] %vm774, %v771
      %777 = vst.msk [vmem:[%s280 + $0x10] sm:$0xff] %vm774, %v772
      %778 = vst.msk [vmem:[%s280 + $0x18] sm:$0xff] %vm774, %v773
      %s779 = smul.u32 4, %s18
      %p780 = scmp.lt.s32.totalorder %s779, 7
      %s781 = scalar_select %p780, %s779, 7
      %s782 = smul.addr %s781, 8
      %s783 = scalar_lea.vmem %s7, %s782
      // Predicated region
      $region49: #{tpu_custom_call.1} parent=47 // pred_check
        %p784 = pneg %p188
      $region50: #{tpu_custom_call.1} parent=47 // pred_check_branch
        %786 = sbr.rel (%p784) target = $region52
      $region51: #{tpu_custom_call.1} parent=47 // pred_region
        %s787 = smul.u32 4, %s18
      $region52: #{tpu_custom_call.1} parent=47 // pred_fallthru
        _
    $region48: #{tpu_custom_call.1} parent=5 // pred_fallthru
      _
    %p788 = scmp.le.s32.totalorder 2, %s13
    // Predicated region
    $region53: #{tpu_custom_call.1} parent=5 // pred_check
      %p789 = pneg %p788
    $region54: #{tpu_custom_call.1} parent=5 // pred_check_branch
      %791 = sbr.rel (%p789) target = $region56
    $region55: #{tpu_custom_call.1} parent=5 // pred_region
      %s792 = ssub.s32 %s13, 2
      // Predicated region
      $region57: #{tpu_custom_call.1} parent=55 // pred_check
        %p793 = pneg %p194
      $region58: #{tpu_custom_call.1} parent=55 // pred_check_branch
        %795 = sbr.rel (%p793) target = $region60
      $region59: #{tpu_custom_call.1} parent=55 // pred_region
        %s796 = smul.u32 4, %s19
        %p797 = scmp.lt.s32.totalorder %s796, 7
        %s798 = scalar_select %p797, %s796, 7
        %s799 = smul.addr %s798, 8
        %s800 = scalar_lea.vmem %s7, %s799
      $region60: #{tpu_custom_call.1} parent=55 // pred_fallthru
        _
    $region56: #{tpu_custom_call.1} parent=5 // pred_fallthru
      _
  $region6: #{tpu_custom_call.1} parent=0 // loop_footer
    %s17 = sadd.s32 1, %s13
  $region7: #{tpu_custom_call.1} parent=0 // loop_footer_branch
    %12 = sbr.rel target = $region3
  $region8: #{tpu_custom_call.1} parent=0 // loop_exit
    _

</llo_original>
